<compile_context>
chip_gen: v7x
topology: tpu7x:2x2x1
jax: 0.10.0
libtpu: 0.0.40
codegen_flags: <defaults>
</compile_context>

<pallas_src>
import functools

import jax
import jax.numpy as jnp
from jax.experimental import pallas as pl
from jax.experimental.pallas import tpu as pltpu


def _dense_sigmoid(a, w_ref, b_ref):
    """One Linear+Sigmoid layer on the VPU.

    a:     (K, T)  activations, batch in lanes
    w_ref: (N, K)  PyTorch-native weight
    b_ref: (N, 1)  bias
    returns (N, T)
    """
    N, K = w_ref.shape
    T = a.shape[1]
    w = w_ref[...]
    acc = jnp.broadcast_to(b_ref[...], (N, T))
    # K is a small static int (2/16/8/4): fully unrolled broadcast-FMA chain.
    for k in range(K):
        acc = acc + w[:, k:k + 1] * a[k:k + 1, :]
    return jax.nn.sigmoid(acc)


def _mlp_kernel(x_ref,
                w1_ref, b1_ref,
                w2_ref, b2_ref,
                w3_ref, b3_ref,
                w4_ref, b4_ref,
                o_ref):
    """Whole forward pass for one (2, tile_b) batch tile; all weights (<1 KB)
    are constant-index full blocks and stay resident in VMEM across steps."""
    a = x_ref[...]                              # (2, T)
    a = _dense_sigmoid(a, w1_ref, b1_ref)       # (16, T)
    a = _dense_sigmoid(a, w2_ref, b2_ref)       # (8, T)
    a = _dense_sigmoid(a, w3_ref, b3_ref)       # (4, T)
    a = _dense_sigmoid(a, w4_ref, b4_ref)       # (1, T)
    o_ref[...] = a.astype(o_ref.dtype)          # lane-dense (1, T) store


def _round_up(n, m):
    return ((n + m - 1) // m) * m


@functools.partial(jax.jit, static_argnames=("tile_b",))
def classifier_forward(x, params, tile_b=2048):
    """x: (B, 2) float32.  params: w{i} as (out, in), b{i} as (out, 1)."""
    B = x.shape[0]

    # Pick a lane-dense tile (multiple of 512) and pad the batch up to it.
    tile = min(tile_b, _round_up(B, 512))
    padded_b = _round_up(B, tile)

    # Wrapper-side layout plumbing: batch -> lane axis, zero-pad the tail.
    x_t = jnp.pad(x.T, ((0, 0), (0, padded_b - B)))        # (2, padded_b)

    w1, b1 = params["w1"], params["b1"]
    w2, b2 = params["w2"], params["b2"]
    w3, b3 = params["w3"], params["b3"]
    w4, b4 = params["w4"], params["b4"]

    grid = (padded_b // tile,)

    # Full (untiled) blocks for weights/biases: block_shape == array shape,
    # constant index_map keeps them VMEM-resident across grid steps.
    def full_spec(arr):
        return pl.BlockSpec(arr.shape, lambda i: (0, 0))

    out_t = pl.pallas_call(
        _mlp_kernel,
        out_shape=jax.ShapeDtypeStruct((1, padded_b), jnp.float32),
        grid=grid,
        in_specs=[
            pl.BlockSpec((2, tile), lambda i: (0, i)),      # x tile, batch in lanes
            full_spec(w1), full_spec(b1),
            full_spec(w2), full_spec(b2),
            full_spec(w3), full_spec(b3),
            full_spec(w4), full_spec(b4),
        ],
        out_specs=pl.BlockSpec((1, tile), lambda i: (0, i)),
        compiler_params=pltpu.CompilerParams(
            dimension_semantics=("parallel",),
            vmem_limit_bytes=48 * 1024 * 1024,              # safe on v5e/v6e/v7x
        ),
    )(x_t, w1, b1, w2, b2, w3, b3, w4, b4)

    # Back to the PyTorch-facing (B, 1) layout, dropping the pad rows.
    return out_t[0, :B][:, None]


def init_params(key):
    """Deterministic init mimicking nn.Linear default: U(-1/sqrt(fan_in), +).
    Weights are PyTorch-native (out_features, in_features); biases (out, 1)."""
    dims = [(2, 16), (16, 8), (8, 4), (4, 1)]
    params = {}
    for idx, (fan_in, fan_out) in enumerate(dims, start=1):
        key, kw, kb = jax.random.split(key, 3)
        bound = 1.0 / jnp.sqrt(jnp.float32(fan_in))
        params[f"w{idx}"] = jax.random.uniform(
            kw, (fan_out, fan_in), jnp.float32, -bound, bound)
        params[f"b{idx}"] = jax.random.uniform(
            kb, (fan_out, 1), jnp.float32, -bound, bound)
    return params


def reference_forward(x, params):
    """Plain-JAX reference for correctness checking (PyTorch semantics)."""
    a = x
    for i in range(1, 5):
        w, b = params[f"w{i}"], params[f"b{i}"]
        a = jax.nn.sigmoid(a @ w.T + b[:, 0])
    return a


if __name__ == "__main__":
    key = jax.random.PRNGKey(0)
    key, kx = jax.random.split(key)

    B = 16                                  # small demo batch (any B works)
    x = jax.random.normal(kx, (B, 2), dtype=jnp.float32)

    params = init_params(key)

    out = classifier_forward(x, params)
    out = jax.block_until_ready(out)

    ref = reference_forward(x, params)
    assert out.shape == (B, 1)
    assert jnp.allclose(out, ref, atol=1e-5, rtol=1e-5), "mismatch vs reference"

    print("KERNEL_OK")
</pallas_src>

<mosaic_0001>
module attributes {stable_mosaic.version = 11 : i64} {
  func.func @_mlp_kernel(%arg0: i32, %arg1: memref<2x512xf32, #tpu.memory_space<vmem>>, %arg2: memref<16x2xf32, #tpu.memory_space<vmem>>, %arg3: memref<16x1xf32, #tpu.memory_space<vmem>>, %arg4: memref<8x16xf32, #tpu.memory_space<vmem>>, %arg5: memref<8x1xf32, #tpu.memory_space<vmem>>, %arg6: memref<4x8xf32, #tpu.memory_space<vmem>>, %arg7: memref<4x1xf32, #tpu.memory_space<vmem>>, %arg8: memref<1x4xf32, #tpu.memory_space<vmem>>, %arg9: memref<1x1xf32, #tpu.memory_space<vmem>>, %arg10: memref<1x512xf32, #tpu.memory_space<vmem>>) attributes {dimension_semantics = [#tpu.dimension_semantics<parallel>], iteration_bounds = array<i64: 1>, scalar_prefetch = 0 : i64, scratch_operands = 0 : i64, tpu.core_type = #tpu.core_type<tc>, window_params = [{transform_indices = @transform_0, window_bounds = array<i64: 2, 512>}, {pipeline_mode = #tpu.pipeline_mode<synchronous>, transform_indices = @transform_1, window_bounds = array<i64: 16, 2>}, {pipeline_mode = #tpu.pipeline_mode<synchronous>, transform_indices = @transform_2, window_bounds = array<i64: 16, 1>}, {pipeline_mode = #tpu.pipeline_mode<synchronous>, transform_indices = @transform_3, window_bounds = array<i64: 8, 16>}, {pipeline_mode = #tpu.pipeline_mode<synchronous>, transform_indices = @transform_4, window_bounds = array<i64: 8, 1>}, {pipeline_mode = #tpu.pipeline_mode<synchronous>, transform_indices = @transform_5, window_bounds = array<i64: 4, 8>}, {pipeline_mode = #tpu.pipeline_mode<synchronous>, transform_indices = @transform_6, window_bounds = array<i64: 4, 1>}, {pipeline_mode = #tpu.pipeline_mode<synchronous>, transform_indices = @transform_7, window_bounds = array<i64: 1, 4>}, {pipeline_mode = #tpu.pipeline_mode<synchronous>, transform_indices = @transform_8, window_bounds = array<i64: 1, 1>}, {transform_indices = @transform_9, window_bounds = array<i64: 1, 512>}]} {
    %c0 = arith.constant 0 : index
    %c0_0 = arith.constant 0 : index
    %0 = vector.load %arg1[%c0, %c0_0] : memref<2x512xf32, #tpu.memory_space<vmem>>, vector<2x512xf32>
    %c0_1 = arith.constant 0 : index
    %c0_2 = arith.constant 0 : index
    %1 = vector.load %arg2[%c0_1, %c0_2] : memref<16x2xf32, #tpu.memory_space<vmem>>, vector<16x2xf32>
    %c0_3 = arith.constant 0 : index
    %c0_4 = arith.constant 0 : index
    %2 = vector.load %arg3[%c0_3, %c0_4] : memref<16x1xf32, #tpu.memory_space<vmem>>, vector<16x1xf32>
    %3 = vector.shape_cast %2 : vector<16x1xf32> to vector<16x1xf32>
    %4 = vector.broadcast %3 : vector<16x1xf32> to vector<16x512xf32>
    %5 = vector.extract_strided_slice %1 {offsets = [0, 0], sizes = [16, 1], strides = [1, 1]} : vector<16x2xf32> to vector<16x1xf32>
    %6 = vector.extract_strided_slice %0 {offsets = [0, 0], sizes = [1, 512], strides = [1, 1]} : vector<2x512xf32> to vector<1x512xf32>
    %7 = vector.broadcast %5 : vector<16x1xf32> to vector<16x512xf32>
    %8 = vector.broadcast %6 : vector<1x512xf32> to vector<16x512xf32>
    %9 = arith.mulf %7, %8 : vector<16x512xf32>
    %10 = arith.addf %4, %9 : vector<16x512xf32>
    %11 = vector.extract_strided_slice %1 {offsets = [0, 1], sizes = [16, 1], strides = [1, 1]} : vector<16x2xf32> to vector<16x1xf32>
    %12 = vector.extract_strided_slice %0 {offsets = [1, 0], sizes = [1, 512], strides = [1, 1]} : vector<2x512xf32> to vector<1x512xf32>
    %13 = vector.broadcast %11 : vector<16x1xf32> to vector<16x512xf32>
    %14 = vector.broadcast %12 : vector<1x512xf32> to vector<16x512xf32>
    %15 = arith.mulf %13, %14 : vector<16x512xf32>
    %16 = arith.addf %10, %15 : vector<16x512xf32>
    %17 = arith.negf %16 : vector<16x512xf32>
    %18 = math.exp %17 : vector<16x512xf32>
    %cst = arith.constant 1.000000e+00 : f32
    %19 = vector.broadcast %cst : f32 to vector<16x512xf32>
    %20 = arith.addf %19, %18 : vector<16x512xf32>
    %21 = arith.divf %19, %20 : vector<16x512xf32>
    %c0_5 = arith.constant 0 : index
    %c0_6 = arith.constant 0 : index
    %22 = vector.load %arg4[%c0_5, %c0_6] : memref<8x16xf32, #tpu.memory_space<vmem>>, vector<8x16xf32>
    %c0_7 = arith.constant 0 : index
    %c0_8 = arith.constant 0 : index
    %23 = vector.load %arg5[%c0_7, %c0_8] : memref<8x1xf32, #tpu.memory_space<vmem>>, vector<8x1xf32>
    %24 = vector.shape_cast %23 : vector<8x1xf32> to vector<8x1xf32>
    %25 = vector.broadcast %24 : vector<8x1xf32> to vector<8x512xf32>
    %26 = vector.extract_strided_slice %22 {offsets = [0, 0], sizes = [8, 1], strides = [1, 1]} : vector<8x16xf32> to vector<8x1xf32>
    %27 = vector.extract_strided_slice %21 {offsets = [0, 0], sizes = [1, 512], strides = [1, 1]} : vector<16x512xf32> to vector<1x512xf32>
    %28 = vector.broadcast %26 : vector<8x1xf32> to vector<8x512xf32>
    %29 = vector.broadcast %27 : vector<1x512xf32> to vector<8x512xf32>
    %30 = arith.mulf %28, %29 : vector<8x512xf32>
    %31 = arith.addf %25, %30 : vector<8x512xf32>
    %32 = vector.extract_strided_slice %22 {offsets = [0, 1], sizes = [8, 1], strides = [1, 1]} : vector<8x16xf32> to vector<8x1xf32>
    %33 = vector.extract_strided_slice %21 {offsets = [1, 0], sizes = [1, 512], strides = [1, 1]} : vector<16x512xf32> to vector<1x512xf32>
    %34 = vector.broadcast %32 : vector<8x1xf32> to vector<8x512xf32>
    %35 = vector.broadcast %33 : vector<1x512xf32> to vector<8x512xf32>
    %36 = arith.mulf %34, %35 : vector<8x512xf32>
    %37 = arith.addf %31, %36 : vector<8x512xf32>
    %38 = vector.extract_strided_slice %22 {offsets = [0, 2], sizes = [8, 1], strides = [1, 1]} : vector<8x16xf32> to vector<8x1xf32>
    %39 = vector.extract_strided_slice %21 {offsets = [2, 0], sizes = [1, 512], strides = [1, 1]} : vector<16x512xf32> to vector<1x512xf32>
    %40 = vector.broadcast %38 : vector<8x1xf32> to vector<8x512xf32>
    %41 = vector.broadcast %39 : vector<1x512xf32> to vector<8x512xf32>
    %42 = arith.mulf %40, %41 : vector<8x512xf32>
    %43 = arith.addf %37, %42 : vector<8x512xf32>
    %44 = vector.extract_strided_slice %22 {offsets = [0, 3], sizes = [8, 1], strides = [1, 1]} : vector<8x16xf32> to vector<8x1xf32>
    %45 = vector.extract_strided_slice %21 {offsets = [3, 0], sizes = [1, 512], strides = [1, 1]} : vector<16x512xf32> to vector<1x512xf32>
    %46 = vector.broadcast %44 : vector<8x1xf32> to vector<8x512xf32>
    %47 = vector.broadcast %45 : vector<1x512xf32> to vector<8x512xf32>
    %48 = arith.mulf %46, %47 : vector<8x512xf32>
    %49 = arith.addf %43, %48 : vector<8x512xf32>
    %50 = vector.extract_strided_slice %22 {offsets = [0, 4], sizes = [8, 1], strides = [1, 1]} : vector<8x16xf32> to vector<8x1xf32>
    %51 = vector.extract_strided_slice %21 {offsets = [4, 0], sizes = [1, 512], strides = [1, 1]} : vector<16x512xf32> to vector<1x512xf32>
    %52 = vector.broadcast %50 : vector<8x1xf32> to vector<8x512xf32>
    %53 = vector.broadcast %51 : vector<1x512xf32> to vector<8x512xf32>
    %54 = arith.mulf %52, %53 : vector<8x512xf32>
    %55 = arith.addf %49, %54 : vector<8x512xf32>
    %56 = vector.extract_strided_slice %22 {offsets = [0, 5], sizes = [8, 1], strides = [1, 1]} : vector<8x16xf32> to vector<8x1xf32>
    %57 = vector.extract_strided_slice %21 {offsets = [5, 0], sizes = [1, 512], strides = [1, 1]} : vector<16x512xf32> to vector<1x512xf32>
    %58 = vector.broadcast %56 : vector<8x1xf32> to vector<8x512xf32>
    %59 = vector.broadcast %57 : vector<1x512xf32> to vector<8x512xf32>
    %60 = arith.mulf %58, %59 : vector<8x512xf32>
    %61 = arith.addf %55, %60 : vector<8x512xf32>
    %62 = vector.extract_strided_slice %22 {offsets = [0, 6], sizes = [8, 1], strides = [1, 1]} : vector<8x16xf32> to vector<8x1xf32>
    %63 = vector.extract_strided_slice %21 {offsets = [6, 0], sizes = [1, 512], strides = [1, 1]} : vector<16x512xf32> to vector<1x512xf32>
    %64 = vector.broadcast %62 : vector<8x1xf32> to vector<8x512xf32>
    %65 = vector.broadcast %63 : vector<1x512xf32> to vector<8x512xf32>
    %66 = arith.mulf %64, %65 : vector<8x512xf32>
    %67 = arith.addf %61, %66 : vector<8x512xf32>
    %68 = vector.extract_strided_slice %22 {offsets = [0, 7], sizes = [8, 1], strides = [1, 1]} : vector<8x16xf32> to vector<8x1xf32>
    %69 = vector.extract_strided_slice %21 {offsets = [7, 0], sizes = [1, 512], strides = [1, 1]} : vector<16x512xf32> to vector<1x512xf32>
    %70 = vector.broadcast %68 : vector<8x1xf32> to vector<8x512xf32>
    %71 = vector.broadcast %69 : vector<1x512xf32> to vector<8x512xf32>
    %72 = arith.mulf %70, %71 : vector<8x512xf32>
    %73 = arith.addf %67, %72 : vector<8x512xf32>
    %74 = vector.extract_strided_slice %22 {offsets = [0, 8], sizes = [8, 1], strides = [1, 1]} : vector<8x16xf32> to vector<8x1xf32>
    %75 = vector.extract_strided_slice %21 {offsets = [8, 0], sizes = [1, 512], strides = [1, 1]} : vector<16x512xf32> to vector<1x512xf32>
    %76 = vector.broadcast %74 : vector<8x1xf32> to vector<8x512xf32>
    %77 = vector.broadcast %75 : vector<1x512xf32> to vector<8x512xf32>
    %78 = arith.mulf %76, %77 : vector<8x512xf32>
    %79 = arith.addf %73, %78 : vector<8x512xf32>
    %80 = vector.extract_strided_slice %22 {offsets = [0, 9], sizes = [8, 1], strides = [1, 1]} : vector<8x16xf32> to vector<8x1xf32>
    %81 = vector.extract_strided_slice %21 {offsets = [9, 0], sizes = [1, 512], strides = [1, 1]} : vector<16x512xf32> to vector<1x512xf32>
    %82 = vector.broadcast %80 : vector<8x1xf32> to vector<8x512xf32>
    %83 = vector.broadcast %81 : vector<1x512xf32> to vector<8x512xf32>
    %84 = arith.mulf %82, %83 : vector<8x512xf32>
    %85 = arith.addf %79, %84 : vector<8x512xf32>
    %86 = vector.extract_strided_slice %22 {offsets = [0, 10], sizes = [8, 1], strides = [1, 1]} : vector<8x16xf32> to vector<8x1xf32>
    %87 = vector.extract_strided_slice %21 {offsets = [10, 0], sizes = [1, 512], strides = [1, 1]} : vector<16x512xf32> to vector<1x512xf32>
    %88 = vector.broadcast %86 : vector<8x1xf32> to vector<8x512xf32>
    %89 = vector.broadcast %87 : vector<1x512xf32> to vector<8x512xf32>
    %90 = arith.mulf %88, %89 : vector<8x512xf32>
    %91 = arith.addf %85, %90 : vector<8x512xf32>
    %92 = vector.extract_strided_slice %22 {offsets = [0, 11], sizes = [8, 1], strides = [1, 1]} : vector<8x16xf32> to vector<8x1xf32>
    %93 = vector.extract_strided_slice %21 {offsets = [11, 0], sizes = [1, 512], strides = [1, 1]} : vector<16x512xf32> to vector<1x512xf32>
    %94 = vector.broadcast %92 : vector<8x1xf32> to vector<8x512xf32>
    %95 = vector.broadcast %93 : vector<1x512xf32> to vector<8x512xf32>
    %96 = arith.mulf %94, %95 : vector<8x512xf32>
    %97 = arith.addf %91, %96 : vector<8x512xf32>
    %98 = vector.extract_strided_slice %22 {offsets = [0, 12], sizes = [8, 1], strides = [1, 1]} : vector<8x16xf32> to vector<8x1xf32>
    %99 = vector.extract_strided_slice %21 {offsets = [12, 0], sizes = [1, 512], strides = [1, 1]} : vector<16x512xf32> to vector<1x512xf32>
    %100 = vector.broadcast %98 : vector<8x1xf32> to vector<8x512xf32>
    %101 = vector.broadcast %99 : vector<1x512xf32> to vector<8x512xf32>
    %102 = arith.mulf %100, %101 : vector<8x512xf32>
    %103 = arith.addf %97, %102 : vector<8x512xf32>
    %104 = vector.extract_strided_slice %22 {offsets = [0, 13], sizes = [8, 1], strides = [1, 1]} : vector<8x16xf32> to vector<8x1xf32>
    %105 = vector.extract_strided_slice %21 {offsets = [13, 0], sizes = [1, 512], strides = [1, 1]} : vector<16x512xf32> to vector<1x512xf32>
    %106 = vector.broadcast %104 : vector<8x1xf32> to vector<8x512xf32>
    %107 = vector.broadcast %105 : vector<1x512xf32> to vector<8x512xf32>
    %108 = arith.mulf %106, %107 : vector<8x512xf32>
    %109 = arith.addf %103, %108 : vector<8x512xf32>
    %110 = vector.extract_strided_slice %22 {offsets = [0, 14], sizes = [8, 1], strides = [1, 1]} : vector<8x16xf32> to vector<8x1xf32>
    %111 = vector.extract_strided_slice %21 {offsets = [14, 0], sizes = [1, 512], strides = [1, 1]} : vector<16x512xf32> to vector<1x512xf32>
    %112 = vector.broadcast %110 : vector<8x1xf32> to vector<8x512xf32>
    %113 = vector.broadcast %111 : vector<1x512xf32> to vector<8x512xf32>
    %114 = arith.mulf %112, %113 : vector<8x512xf32>
    %115 = arith.addf %109, %114 : vector<8x512xf32>
    %116 = vector.extract_strided_slice %22 {offsets = [0, 15], sizes = [8, 1], strides = [1, 1]} : vector<8x16xf32> to vector<8x1xf32>
    %117 = vector.extract_strided_slice %21 {offsets = [15, 0], sizes = [1, 512], strides = [1, 1]} : vector<16x512xf32> to vector<1x512xf32>
    %118 = vector.broadcast %116 : vector<8x1xf32> to vector<8x512xf32>
    %119 = vector.broadcast %117 : vector<1x512xf32> to vector<8x512xf32>
    %120 = arith.mulf %118, %119 : vector<8x512xf32>
    %121 = arith.addf %115, %120 : vector<8x512xf32>
    %122 = arith.negf %121 : vector<8x512xf32>
    %123 = math.exp %122 : vector<8x512xf32>
    %cst_9 = arith.constant 1.000000e+00 : f32
    %124 = vector.broadcast %cst_9 : f32 to vector<8x512xf32>
    %125 = arith.addf %124, %123 : vector<8x512xf32>
    %126 = arith.divf %124, %125 : vector<8x512xf32>
    %c0_10 = arith.constant 0 : index
    %c0_11 = arith.constant 0 : index
    %127 = vector.load %arg6[%c0_10, %c0_11] : memref<4x8xf32, #tpu.memory_space<vmem>>, vector<4x8xf32>
    %c0_12 = arith.constant 0 : index
    %c0_13 = arith.constant 0 : index
    %128 = vector.load %arg7[%c0_12, %c0_13] : memref<4x1xf32, #tpu.memory_space<vmem>>, vector<4x1xf32>
    %129 = vector.shape_cast %128 : vector<4x1xf32> to vector<4x1xf32>
    %130 = vector.broadcast %129 : vector<4x1xf32> to vector<4x512xf32>
    %131 = vector.extract_strided_slice %127 {offsets = [0, 0], sizes = [4, 1], strides = [1, 1]} : vector<4x8xf32> to vector<4x1xf32>
    %132 = vector.extract_strided_slice %126 {offsets = [0, 0], sizes = [1, 512], strides = [1, 1]} : vector<8x512xf32> to vector<1x512xf32>
    %133 = vector.broadcast %131 : vector<4x1xf32> to vector<4x512xf32>
    %134 = vector.broadcast %132 : vector<1x512xf32> to vector<4x512xf32>
    %135 = arith.mulf %133, %134 : vector<4x512xf32>
    %136 = arith.addf %130, %135 : vector<4x512xf32>
    %137 = vector.extract_strided_slice %127 {offsets = [0, 1], sizes = [4, 1], strides = [1, 1]} : vector<4x8xf32> to vector<4x1xf32>
    %138 = vector.extract_strided_slice %126 {offsets = [1, 0], sizes = [1, 512], strides = [1, 1]} : vector<8x512xf32> to vector<1x512xf32>
    %139 = vector.broadcast %137 : vector<4x1xf32> to vector<4x512xf32>
    %140 = vector.broadcast %138 : vector<1x512xf32> to vector<4x512xf32>
    %141 = arith.mulf %139, %140 : vector<4x512xf32>
    %142 = arith.addf %136, %141 : vector<4x512xf32>
    %143 = vector.extract_strided_slice %127 {offsets = [0, 2], sizes = [4, 1], strides = [1, 1]} : vector<4x8xf32> to vector<4x1xf32>
    %144 = vector.extract_strided_slice %126 {offsets = [2, 0], sizes = [1, 512], strides = [1, 1]} : vector<8x512xf32> to vector<1x512xf32>
    %145 = vector.broadcast %143 : vector<4x1xf32> to vector<4x512xf32>
    %146 = vector.broadcast %144 : vector<1x512xf32> to vector<4x512xf32>
    %147 = arith.mulf %145, %146 : vector<4x512xf32>
    %148 = arith.addf %142, %147 : vector<4x512xf32>
    %149 = vector.extract_strided_slice %127 {offsets = [0, 3], sizes = [4, 1], strides = [1, 1]} : vector<4x8xf32> to vector<4x1xf32>
    %150 = vector.extract_strided_slice %126 {offsets = [3, 0], sizes = [1, 512], strides = [1, 1]} : vector<8x512xf32> to vector<1x512xf32>
    %151 = vector.broadcast %149 : vector<4x1xf32> to vector<4x512xf32>
    %152 = vector.broadcast %150 : vector<1x512xf32> to vector<4x512xf32>
    %153 = arith.mulf %151, %152 : vector<4x512xf32>
    %154 = arith.addf %148, %153 : vector<4x512xf32>
    %155 = vector.extract_strided_slice %127 {offsets = [0, 4], sizes = [4, 1], strides = [1, 1]} : vector<4x8xf32> to vector<4x1xf32>
    %156 = vector.extract_strided_slice %126 {offsets = [4, 0], sizes = [1, 512], strides = [1, 1]} : vector<8x512xf32> to vector<1x512xf32>
    %157 = vector.broadcast %155 : vector<4x1xf32> to vector<4x512xf32>
    %158 = vector.broadcast %156 : vector<1x512xf32> to vector<4x512xf32>
    %159 = arith.mulf %157, %158 : vector<4x512xf32>
    %160 = arith.addf %154, %159 : vector<4x512xf32>
    %161 = vector.extract_strided_slice %127 {offsets = [0, 5], sizes = [4, 1], strides = [1, 1]} : vector<4x8xf32> to vector<4x1xf32>
    %162 = vector.extract_strided_slice %126 {offsets = [5, 0], sizes = [1, 512], strides = [1, 1]} : vector<8x512xf32> to vector<1x512xf32>
    %163 = vector.broadcast %161 : vector<4x1xf32> to vector<4x512xf32>
    %164 = vector.broadcast %162 : vector<1x512xf32> to vector<4x512xf32>
    %165 = arith.mulf %163, %164 : vector<4x512xf32>
    %166 = arith.addf %160, %165 : vector<4x512xf32>
    %167 = vector.extract_strided_slice %127 {offsets = [0, 6], sizes = [4, 1], strides = [1, 1]} : vector<4x8xf32> to vector<4x1xf32>
    %168 = vector.extract_strided_slice %126 {offsets = [6, 0], sizes = [1, 512], strides = [1, 1]} : vector<8x512xf32> to vector<1x512xf32>
    %169 = vector.broadcast %167 : vector<4x1xf32> to vector<4x512xf32>
    %170 = vector.broadcast %168 : vector<1x512xf32> to vector<4x512xf32>
    %171 = arith.mulf %169, %170 : vector<4x512xf32>
    %172 = arith.addf %166, %171 : vector<4x512xf32>
    %173 = vector.extract_strided_slice %127 {offsets = [0, 7], sizes = [4, 1], strides = [1, 1]} : vector<4x8xf32> to vector<4x1xf32>
    %174 = vector.extract_strided_slice %126 {offsets = [7, 0], sizes = [1, 512], strides = [1, 1]} : vector<8x512xf32> to vector<1x512xf32>
    %175 = vector.broadcast %173 : vector<4x1xf32> to vector<4x512xf32>
    %176 = vector.broadcast %174 : vector<1x512xf32> to vector<4x512xf32>
    %177 = arith.mulf %175, %176 : vector<4x512xf32>
    %178 = arith.addf %172, %177 : vector<4x512xf32>
    %179 = arith.negf %178 : vector<4x512xf32>
    %180 = math.exp %179 : vector<4x512xf32>
    %cst_14 = arith.constant 1.000000e+00 : f32
    %181 = vector.broadcast %cst_14 : f32 to vector<4x512xf32>
    %182 = arith.addf %181, %180 : vector<4x512xf32>
    %183 = arith.divf %181, %182 : vector<4x512xf32>
    %c0_15 = arith.constant 0 : index
    %c0_16 = arith.constant 0 : index
    %184 = vector.load %arg8[%c0_15, %c0_16] : memref<1x4xf32, #tpu.memory_space<vmem>>, vector<1x4xf32>
    %c0_17 = arith.constant 0 : index
    %c0_18 = arith.constant 0 : index
    %185 = vector.load %arg9[%c0_17, %c0_18] : memref<1x1xf32, #tpu.memory_space<vmem>>, vector<1x1xf32>
    %186 = vector.shape_cast %185 : vector<1x1xf32> to vector<1x1xf32>
    %187 = vector.broadcast %186 : vector<1x1xf32> to vector<1x512xf32>
    %188 = vector.extract_strided_slice %184 {offsets = [0, 0], sizes = [1, 1], strides = [1, 1]} : vector<1x4xf32> to vector<1x1xf32>
    %189 = vector.extract_strided_slice %183 {offsets = [0, 0], sizes = [1, 512], strides = [1, 1]} : vector<4x512xf32> to vector<1x512xf32>
    %190 = vector.broadcast %188 : vector<1x1xf32> to vector<1x512xf32>
    %191 = arith.mulf %190, %189 : vector<1x512xf32>
    %192 = arith.addf %187, %191 : vector<1x512xf32>
    %193 = vector.extract_strided_slice %184 {offsets = [0, 1], sizes = [1, 1], strides = [1, 1]} : vector<1x4xf32> to vector<1x1xf32>
    %194 = vector.extract_strided_slice %183 {offsets = [1, 0], sizes = [1, 512], strides = [1, 1]} : vector<4x512xf32> to vector<1x512xf32>
    %195 = vector.broadcast %193 : vector<1x1xf32> to vector<1x512xf32>
    %196 = arith.mulf %195, %194 : vector<1x512xf32>
    %197 = arith.addf %192, %196 : vector<1x512xf32>
    %198 = vector.extract_strided_slice %184 {offsets = [0, 2], sizes = [1, 1], strides = [1, 1]} : vector<1x4xf32> to vector<1x1xf32>
    %199 = vector.extract_strided_slice %183 {offsets = [2, 0], sizes = [1, 512], strides = [1, 1]} : vector<4x512xf32> to vector<1x512xf32>
    %200 = vector.broadcast %198 : vector<1x1xf32> to vector<1x512xf32>
    %201 = arith.mulf %200, %199 : vector<1x512xf32>
    %202 = arith.addf %197, %201 : vector<1x512xf32>
    %203 = vector.extract_strided_slice %184 {offsets = [0, 3], sizes = [1, 1], strides = [1, 1]} : vector<1x4xf32> to vector<1x1xf32>
    %204 = vector.extract_strided_slice %183 {offsets = [3, 0], sizes = [1, 512], strides = [1, 1]} : vector<4x512xf32> to vector<1x512xf32>
    %205 = vector.broadcast %203 : vector<1x1xf32> to vector<1x512xf32>
    %206 = arith.mulf %205, %204 : vector<1x512xf32>
    %207 = arith.addf %202, %206 : vector<1x512xf32>
    %208 = arith.negf %207 : vector<1x512xf32>
    %209 = math.exp %208 : vector<1x512xf32>
    %cst_19 = arith.constant 1.000000e+00 : f32
    %210 = vector.broadcast %cst_19 : f32 to vector<1x512xf32>
    %211 = arith.addf %210, %209 : vector<1x512xf32>
    %212 = arith.divf %210, %211 : vector<1x512xf32>
    %c0_20 = arith.constant 0 : index
    %c0_21 = arith.constant 0 : index
    %213 = vector.load %arg10[%c0_20, %c0_21] : memref<1x512xf32, #tpu.memory_space<vmem>>, vector<1x512xf32>
    tpu.vector_store %arg10[%c0_20, %c0_21], %212 {strides = array<i32>} : memref<1x512xf32, #tpu.memory_space<vmem>>, vector<1x512xf32>,
    return
  }
  func.func @transform_0(%arg0: i32) -> (i32, i32) {
    %c0_i32 = arith.constant 0 : i32
    %c0_i32_0 = arith.constant 0 : i32
    return %c0_i32, %arg0 : i32, i32
  }
  func.func @transform_1(%arg0: i32) -> (i32, i32) {
    %c0_i32 = arith.constant 0 : i32
    %c0_i32_0 = arith.constant 0 : i32
    %c0_i32_1 = arith.constant 0 : i32
    return %c0_i32, %c0_i32_0 : i32, i32
  }
  func.func @transform_2(%arg0: i32) -> (i32, i32) {
    %c0_i32 = arith.constant 0 : i32
    %c0_i32_0 = arith.constant 0 : i32
    %c0_i32_1 = arith.constant 0 : i32
    return %c0_i32, %c0_i32_0 : i32, i32
  }
  func.func @transform_3(%arg0: i32) -> (i32, i32) {
    %c0_i32 = arith.constant 0 : i32
    %c0_i32_0 = arith.constant 0 : i32
    %c0_i32_1 = arith.constant 0 : i32
    return %c0_i32, %c0_i32_0 : i32, i32
  }
  func.func @transform_4(%arg0: i32) -> (i32, i32) {
    %c0_i32 = arith.constant 0 : i32
    %c0_i32_0 = arith.constant 0 : i32
    %c0_i32_1 = arith.constant 0 : i32
    return %c0_i32, %c0_i32_0 : i32, i32
  }
  func.func @transform_5(%arg0: i32) -> (i32, i32) {
    %c0_i32 = arith.constant 0 : i32
    %c0_i32_0 = arith.constant 0 : i32
    %c0_i32_1 = arith.constant 0 : i32
    return %c0_i32, %c0_i32_0 : i32, i32
  }
  func.func @transform_6(%arg0: i32) -> (i32, i32) {
    %c0_i32 = arith.constant 0 : i32
    %c0_i32_0 = arith.constant 0 : i32
    %c0_i32_1 = arith.constant 0 : i32
    return %c0_i32, %c0_i32_0 : i32, i32
  }
  func.func @transform_7(%arg0: i32) -> (i32, i32) {
    %c0_i32 = arith.constant 0 : i32
    %c0_i32_0 = arith.constant 0 : i32
    %c0_i32_1 = arith.constant 0 : i32
    return %c0_i32, %c0_i32_0 : i32, i32
  }
  func.func @transform_8(%arg0: i32) -> (i32, i32) {
    %c0_i32 = arith.constant 0 : i32
    %c0_i32_0 = arith.constant 0 : i32
    %c0_i32_1 = arith.constant 0 : i32
    return %c0_i32, %c0_i32_0 : i32, i32
  }
  func.func @transform_9(%arg0: i32) -> (i32, i32) {
    %c0_i32 = arith.constant 0 : i32
    %c0_i32_0 = arith.constant 0 : i32
    return %c0_i32, %arg0 : i32, i32
  }
}

</mosaic_0001>

<llo_original>
// kernel: classifier_forward.1
$region0: #{classifier_forward.1}
  #allocation0 [shape = 'u32[]', space=smem, size = 0x4, offset = 0x4, fixed_abs, tag = 'smem constant byte address 0x4 - core index']
  #allocation1 [shape = 'u32[144,128]{1,0:T(1,128)}', space=vmem, size = 0x12000, scoped, tag = 'internal scratch']
  #allocation2 [shape = 'f32[1,1]{1,0:T(1,128)S(1)}', space=vmem, size = 0x200, scoped, tag = 'scoped memory for classifier_forward.1']
  %s0 = inlined_call_operand.vmem [shape: f32[2,512], index: 0, kind: input, shape index: {}]
  %s1 = inlined_call_operand.vmem [shape: f32[16,2], index: 1, kind: input, shape index: {}]
  %s2 = inlined_call_operand.vmem [shape: f32[16,1], index: 2, kind: input, shape index: {}]
  %s3 = inlined_call_operand.vmem [shape: f32[8,16], index: 3, kind: input, shape index: {}]
  %s4 = inlined_call_operand.vmem [shape: f32[8,1], index: 4, kind: input, shape index: {}]
  %s5 = inlined_call_operand.vmem [shape: f32[4,8], index: 5, kind: input, shape index: {}]
  %s6 = inlined_call_operand.vmem [shape: f32[4,1], index: 6, kind: input, shape index: {}]
  %s7 = inlined_call_operand.vmem [shape: f32[1,4], index: 7, kind: input, shape index: {}]
  %s8 = inlined_call_operand.<no memory space> [shape: f32[1,1], index: 8, kind: input, shape index: {}]
  %s9 = inlined_call_operand.vmem [shape: f32[1,512], index: 9, kind: output, shape index: {}]
  %s10 = sld [smem:[#allocation0]]
  $region46: #{classifier_forward.1} parent=0
    _
  %s12 = ssub.s32 1, %s10
  %s13 = scalar_select 0, %s12, %s10
  %v14 = vstv %s8
  %15 = vst [vmem:[#allocation2] sm:$0x1] %v14
  // Predicated region
  $region2: #{classifier_forward.1} parent=0 // pred_check
    _
  $region3: #{classifier_forward.1} parent=0 // pred_check_branch
    %17 = sbr.rel (0) target = $region5
  $region4: #{classifier_forward.1} parent=0 // pred_region
    _
  $region5: #{classifier_forward.1} parent=0 // pred_fallthru
    _
  // Predicated region
  $region6: #{classifier_forward.1} parent=0 // pred_check
    _
  $region7: #{classifier_forward.1} parent=0 // pred_check_branch
    %19 = sbr.rel (0) target = $region9
  $region8: #{classifier_forward.1} parent=0 // pred_region
    _
  $region9: #{classifier_forward.1} parent=0 // pred_fallthru
    _
  // Predicated region
  $region10: #{classifier_forward.1} parent=0 // pred_check
    _
  $region11: #{classifier_forward.1} parent=0 // pred_check_branch
    %21 = sbr.rel (0) target = $region13
  $region12: #{classifier_forward.1} parent=0 // pred_region
    _
  $region13: #{classifier_forward.1} parent=0 // pred_fallthru
    _
  // Predicated region
  $region14: #{classifier_forward.1} parent=0 // pred_check
    _
  $region15: #{classifier_forward.1} parent=0 // pred_check_branch
    %23 = sbr.rel (0) target = $region17
  $region16: #{classifier_forward.1} parent=0 // pred_region
    _
  $region17: #{classifier_forward.1} parent=0 // pred_fallthru
    _
  // Predicated region
  $region18: #{classifier_forward.1} parent=0 // pred_check
    _
  $region19: #{classifier_forward.1} parent=0 // pred_check_branch
    %25 = sbr.rel (0) target = $region21
  $region20: #{classifier_forward.1} parent=0 // pred_region
    _
  $region21: #{classifier_forward.1} parent=0 // pred_fallthru
    _
  // Predicated region
  $region22: #{classifier_forward.1} parent=0 // pred_check
    _
  $region23: #{classifier_forward.1} parent=0 // pred_check_branch
    %27 = sbr.rel (0) target = $region25
  $region24: #{classifier_forward.1} parent=0 // pred_region
    _
  $region25: #{classifier_forward.1} parent=0 // pred_fallthru
    _
  // Predicated region
  $region26: #{classifier_forward.1} parent=0 // pred_check
    _
  $region27: #{classifier_forward.1} parent=0 // pred_check_branch
    %29 = sbr.rel (0) target = $region29
  $region28: #{classifier_forward.1} parent=0 // pred_region
    _
  $region29: #{classifier_forward.1} parent=0 // pred_fallthru
    _
  // Predicated region
  $region30: #{classifier_forward.1} parent=0 // pred_check
    _
  $region31: #{classifier_forward.1} parent=0 // pred_check_branch
    %31 = sbr.rel (0) target = $region33
  $region32: #{classifier_forward.1} parent=0 // pred_region
    _
  $region33: #{classifier_forward.1} parent=0 // pred_fallthru
    _
  // Predicated region
  $region34: #{classifier_forward.1} parent=0 // pred_check
    _
  $region35: #{classifier_forward.1} parent=0 // pred_check_branch
    %33 = sbr.rel (0) target = $region37
  $region36: #{classifier_forward.1} parent=0 // pred_region
    _
  $region37: #{classifier_forward.1} parent=0 // pred_fallthru
    _
  %v34 = vld [vmem:[%s0] sm:$0xff]
  %v35 = vld [vmem:[%s1] sm:$0xff]
  %v36 = vld [vmem:[%s1 + $0x8] sm:$0xff]
  %v37 = vld [vmem:[%s2] sm:$0xff]
  %v38 = vld [vmem:[%s2 + $0x8] sm:$0xff]
  %40 = vset.pattern.permute.xlu0 0
  %41 = vperm.xlu0 %40, %v37
  %v42 = vpop.permute.xlu0 %41
  %45 = vset.pattern.permute.xlu0 0
  %46 = vperm.xlu0 %45, %v38
  %v47 = vpop.permute.xlu0 %46
  %50 = vset.pattern.permute.xlu0 0
  %51 = vperm.xlu0 %50, %v35
  %v52 = vpop.permute.xlu0 %51
  %55 = vset.pattern.permute.xlu0 0
  %56 = vperm.xlu0 %55, %v36
  %v57 = vpop.permute.xlu0 %56
  %v60 = vlaneseq
  %v61 = vshrl.u32 %v60, 7
  %v62 = vsub.s32 0, %v61
  %v63 = vrot.slane %v34, %v62
  %v64 = vlaneseq
  %v65 = vshrl.u32 %v64, 7
  %v66 = vsub.s32 2, %v65
  %v67 = vrot.slane %v34, %v66
  %v68 = vlaneseq
  %v69 = vshrl.u32 %v68, 7
  %v70 = vsub.s32 4, %v69
  %v71 = vrot.slane %v34, %v70
  %v72 = vlaneseq
  %v73 = vshrl.u32 %v72, 7
  %v74 = vsub.s32 6, %v73
  %v75 = vrot.slane %v34, %v74
  %v80 = vlaneseq
  %v81 = vshrl.u32 %v80, 7
  %v82 = vsub.s32 0, %v81
  %v83 = vrot.slane %v63, %v82
  %v84 = vlaneseq
  %v85 = vshrl.u32 %v84, 7
  %v86 = vsub.s32 0, %v85
  %v87 = vrot.slane %v67, %v86
  %v88 = vlaneseq
  %v89 = vshrl.u32 %v88, 7
  %v90 = vsub.s32 0, %v89
  %v91 = vrot.slane %v71, %v90
  %v92 = vlaneseq
  %v93 = vshrl.u32 %v92, 7
  %v94 = vsub.s32 0, %v93
  %v95 = vrot.slane %v75, %v94
  %v96 = vmul.f32 %v52, %v83
  %v97 = vmul.f32 %v52, %v87
  %v98 = vmul.f32 %v52, %v91
  %v99 = vmul.f32 %v52, %v95
  %v100 = vmul.f32 %v57, %v83
  %v101 = vmul.f32 %v57, %v87
  %v102 = vmul.f32 %v57, %v91
  %v103 = vmul.f32 %v57, %v95
  %v104 = vadd.f32 %v42, %v96
  %v105 = vadd.f32 %v42, %v97
  %v106 = vadd.f32 %v42, %v98
  %v107 = vadd.f32 %v42, %v99
  %v108 = vadd.f32 %v47, %v100
  %v109 = vadd.f32 %v47, %v101
  %v110 = vadd.f32 %v47, %v102
  %v111 = vadd.f32 %v47, %v103
  %112 = vset.pattern.permute.xlu0 1
  %113 = vperm.xlu0 %112, %v35
  %v114 = vpop.permute.xlu0 %113
  %116 = vset.pattern.permute.xlu0 1
  %117 = vperm.xlu0 %116, %v36
  %v118 = vpop.permute.xlu0 %117
  %v120 = vlaneseq
  %v121 = vshrl.u32 %v120, 7
  %v122 = vsub.s32 1, %v121
  %v123 = vrot.slane %v34, %v122
  %v124 = vlaneseq
  %v125 = vshrl.u32 %v124, 7
  %v126 = vsub.s32 3, %v125
  %v127 = vrot.slane %v34, %v126
  %v128 = vlaneseq
  %v129 = vshrl.u32 %v128, 7
  %v130 = vsub.s32 5, %v129
  %v131 = vrot.slane %v34, %v130
  %v132 = vlaneseq
  %v133 = vshrl.u32 %v132, 7
  %v134 = vsub.s32 7, %v133
  %v135 = vrot.slane %v34, %v134
  %v140 = vlaneseq
  %v141 = vshrl.u32 %v140, 7
  %v142 = vsub.s32 1, %v141
  %v143 = vrot.slane %v123, %v142
  %v144 = vlaneseq
  %v145 = vshrl.u32 %v144, 7
  %v146 = vsub.s32 1, %v145
  %v147 = vrot.slane %v127, %v146
  %v148 = vlaneseq
  %v149 = vshrl.u32 %v148, 7
  %v150 = vsub.s32 1, %v149
  %v151 = vrot.slane %v131, %v150
  %v152 = vlaneseq
  %v153 = vshrl.u32 %v152, 7
  %v154 = vsub.s32 1, %v153
  %v155 = vrot.slane %v135, %v154
  %v156 = vmul.f32 %v114, %v143
  %v157 = vmul.f32 %v114, %v147
  %v158 = vmul.f32 %v114, %v151
  %v159 = vmul.f32 %v114, %v155
  %v160 = vmul.f32 %v118, %v143
  %v161 = vmul.f32 %v118, %v147
  %v162 = vmul.f32 %v118, %v151
  %v163 = vmul.f32 %v118, %v155
  %v164 = vadd.f32 %v104, %v156
  %v165 = vadd.f32 %v105, %v157
  %v166 = vadd.f32 %v106, %v158
  %v167 = vadd.f32 %v107, %v159
  %v168 = vadd.f32 %v108, %v160
  %v169 = vadd.f32 %v109, %v161
  %v170 = vadd.f32 %v110, %v162
  %v171 = vadd.f32 %v111, %v163
  %v172 = vxor.u32 %v164, 2147483648
  %v173 = vxor.u32 %v165, 2147483648
  %v174 = vxor.u32 %v166, 2147483648
  %v175 = vxor.u32 %v167, 2147483648
  %v176 = vxor.u32 %v168, 2147483648
  %v177 = vxor.u32 %v169, 2147483648
  %v178 = vxor.u32 %v170, 2147483648
  %v179 = vxor.u32 %v171, 2147483648
  %v180 = vmul.f32 %v172, 1.442695
  %v181 = vpow.pop %v180
  %v182 = vmul.f32 %v173, 1.442695
  %v183 = vpow.pop %v182
  %v184 = vmul.f32 %v174, 1.442695
  %v185 = vpow.pop %v184
  %v186 = vmul.f32 %v175, 1.442695
  %v187 = vpow.pop %v186
  %v188 = vmul.f32 %v176, 1.442695
  %v189 = vpow.pop %v188
  %v190 = vmul.f32 %v177, 1.442695
  %v191 = vpow.pop %v190
  %v192 = vmul.f32 %v178, 1.442695
  %v193 = vpow.pop %v192
  %v194 = vmul.f32 %v179, 1.442695
  %v195 = vpow.pop %v194
  %v196 = vadd.f32 %v181, 1.0
  %v197 = vadd.f32 %v183, 1.0
  %v198 = vadd.f32 %v185, 1.0
  %v199 = vadd.f32 %v187, 1.0
  %v200 = vadd.f32 %v189, 1.0
  %v201 = vadd.f32 %v191, 1.0
  %v202 = vadd.f32 %v193, 1.0
  %v203 = vadd.f32 %v195, 1.0
  %v204 = vrcp.pop %v196
  %v205 = vmul.f32 1.0, %v204
  %v206 = vrcp.pop %v197
  %v207 = vmul.f32 1.0, %v206
  %v208 = vrcp.pop %v198
  %v209 = vmul.f32 1.0, %v208
  %v210 = vrcp.pop %v199
  %v211 = vmul.f32 1.0, %v210
  %v212 = vrcp.pop %v200
  %v213 = vmul.f32 1.0, %v212
  %v214 = vrcp.pop %v201
  %v215 = vmul.f32 1.0, %v214
  %v216 = vrcp.pop %v202
  %v217 = vmul.f32 1.0, %v216
  %v218 = vrcp.pop %v203
  %v219 = vmul.f32 1.0, %v218
  %v220 = vld [vmem:[%s3] sm:$0xff]
  %v221 = vld [vmem:[%s4] sm:$0xff]
  %223 = vset.pattern.permute.xlu0 0
  %224 = vperm.xlu0 %223, %v221
  %v225 = vpop.permute.xlu0 %224
  %228 = vset.pattern.permute.xlu0 0
  %229 = vperm.xlu0 %228, %v220
  %v230 = vpop.permute.xlu0 %229
  %v232 = vlaneseq
  %v233 = vshrl.u32 %v232, 7
  %v234 = vsub.s32 0, %v233
  %v235 = vrot.slane %v205, %v234
  %v236 = vlaneseq
  %v237 = vshrl.u32 %v236, 7
  %v238 = vsub.s32 0, %v237
  %v239 = vrot.slane %v207, %v238
  %v240 = vlaneseq
  %v241 = vshrl.u32 %v240, 7
  %v242 = vsub.s32 0, %v241
  %v243 = vrot.slane %v209, %v242
  %v244 = vlaneseq
  %v245 = vshrl.u32 %v244, 7
  %v246 = vsub.s32 0, %v245
  %v247 = vrot.slane %v211, %v246
  %v248 = vmul.f32 %v230, %v235
  %v249 = vmul.f32 %v230, %v239
  %v250 = vmul.f32 %v230, %v243
  %v251 = vmul.f32 %v230, %v247
  %v252 = vadd.f32 %v225, %v248
  %v253 = vadd.f32 %v225, %v249
  %v254 = vadd.f32 %v225, %v250
  %v255 = vadd.f32 %v225, %v251
  %256 = vset.pattern.permute.xlu0 1
  %257 = vperm.xlu0 %256, %v220
  %v258 = vpop.permute.xlu0 %257
  %v260 = vlaneseq
  %v261 = vshrl.u32 %v260, 7
  %v262 = vsub.s32 1, %v261
  %v263 = vrot.slane %v205, %v262
  %v264 = vlaneseq
  %v265 = vshrl.u32 %v264, 7
  %v266 = vsub.s32 1, %v265
  %v267 = vrot.slane %v207, %v266
  %v268 = vlaneseq
  %v269 = vshrl.u32 %v268, 7
  %v270 = vsub.s32 1, %v269
  %v271 = vrot.slane %v209, %v270
  %v272 = vlaneseq
  %v273 = vshrl.u32 %v272, 7
  %v274 = vsub.s32 1, %v273
  %v275 = vrot.slane %v211, %v274
  %v276 = vmul.f32 %v258, %v263
  %v277 = vmul.f32 %v258, %v267
  %v278 = vmul.f32 %v258, %v271
  %v279 = vmul.f32 %v258, %v275
  %v280 = vadd.f32 %v252, %v276
  %v281 = vadd.f32 %v253, %v277
  %v282 = vadd.f32 %v254, %v278
  %v283 = vadd.f32 %v255, %v279
  %284 = vset.pattern.permute.xlu0 2
  %285 = vperm.xlu0 %284, %v220
  %v286 = vpop.permute.xlu0 %285
  %v288 = vlaneseq
  %v289 = vshrl.u32 %v288, 7
  %v290 = vsub.s32 2, %v289
  %v291 = vrot.slane %v205, %v290
  %v292 = vlaneseq
  %v293 = vshrl.u32 %v292, 7
  %v294 = vsub.s32 2, %v293
  %v295 = vrot.slane %v207, %v294
  %v296 = vlaneseq
  %v297 = vshrl.u32 %v296, 7
  %v298 = vsub.s32 2, %v297
  %v299 = vrot.slane %v209, %v298
  %v300 = vlaneseq
  %v301 = vshrl.u32 %v300, 7
  %v302 = vsub.s32 2, %v301
  %v303 = vrot.slane %v211, %v302
  %v304 = vmul.f32 %v286, %v291
  %v305 = vmul.f32 %v286, %v295
  %v306 = vmul.f32 %v286, %v299
  %v307 = vmul.f32 %v286, %v303
  %v308 = vadd.f32 %v280, %v304
  %v309 = vadd.f32 %v281, %v305
  %v310 = vadd.f32 %v282, %v306
  %v311 = vadd.f32 %v283, %v307
  %312 = vset.pattern.permute.xlu0 3
  %313 = vperm.xlu0 %312, %v220
  %v314 = vpop.permute.xlu0 %313
  %v316 = vlaneseq
  %v317 = vshrl.u32 %v316, 7
  %v318 = vsub.s32 3, %v317
  %v319 = vrot.slane %v205, %v318
  %v320 = vlaneseq
  %v321 = vshrl.u32 %v320, 7
  %v322 = vsub.s32 3, %v321
  %v323 = vrot.slane %v207, %v322
  %v324 = vlaneseq
  %v325 = vshrl.u32 %v324, 7
  %v326 = vsub.s32 3, %v325
  %v327 = vrot.slane %v209, %v326
  %v328 = vlaneseq
  %v329 = vshrl.u32 %v328, 7
  %v330 = vsub.s32 3, %v329
  %v331 = vrot.slane %v211, %v330
  %v332 = vmul.f32 %v314, %v319
  %v333 = vmul.f32 %v314, %v323
  %v334 = vmul.f32 %v314, %v327
  %v335 = vmul.f32 %v314, %v331
  %v336 = vadd.f32 %v308, %v332
  %v337 = vadd.f32 %v309, %v333
  %v338 = vadd.f32 %v310, %v334
  %v339 = vadd.f32 %v311, %v335
  %340 = vset.pattern.permute.xlu0 4
  %341 = vperm.xlu0 %340, %v220
  %v342 = vpop.permute.xlu0 %341
  %v344 = vlaneseq
  %v345 = vshrl.u32 %v344, 7
  %v346 = vsub.s32 4, %v345
  %v347 = vrot.slane %v205, %v346
  %v348 = vlaneseq
  %v349 = vshrl.u32 %v348, 7
  %v350 = vsub.s32 4, %v349
  %v351 = vrot.slane %v207, %v350
  %v352 = vlaneseq
  %v353 = vshrl.u32 %v352, 7
  %v354 = vsub.s32 4, %v353
  %v355 = vrot.slane %v209, %v354
  %v356 = vlaneseq
  %v357 = vshrl.u32 %v356, 7
  %v358 = vsub.s32 4, %v357
  %v359 = vrot.slane %v211, %v358
  %v360 = vmul.f32 %v342, %v347
  %v361 = vmul.f32 %v342, %v351
  %v362 = vmul.f32 %v342, %v355
  %v363 = vmul.f32 %v342, %v359
  %v364 = vadd.f32 %v336, %v360
  %v365 = vadd.f32 %v337, %v361
  %v366 = vadd.f32 %v338, %v362
  %v367 = vadd.f32 %v339, %v363
  %368 = vset.pattern.permute.xlu0 5
  %369 = vperm.xlu0 %368, %v220
  %v370 = vpop.permute.xlu0 %369
  %v372 = vlaneseq
  %v373 = vshrl.u32 %v372, 7
  %v374 = vsub.s32 5, %v373
  %v375 = vrot.slane %v205, %v374
  %v376 = vlaneseq
  %v377 = vshrl.u32 %v376, 7
  %v378 = vsub.s32 5, %v377
  %v379 = vrot.slane %v207, %v378
  %v380 = vlaneseq
  %v381 = vshrl.u32 %v380, 7
  %v382 = vsub.s32 5, %v381
  %v383 = vrot.slane %v209, %v382
  %v384 = vlaneseq
  %v385 = vshrl.u32 %v384, 7
  %v386 = vsub.s32 5, %v385
  %v387 = vrot.slane %v211, %v386
  %v388 = vmul.f32 %v370, %v375
  %v389 = vmul.f32 %v370, %v379
  %v390 = vmul.f32 %v370, %v383
  %v391 = vmul.f32 %v370, %v387
  %v392 = vadd.f32 %v364, %v388
  %v393 = vadd.f32 %v365, %v389
  %v394 = vadd.f32 %v366, %v390
  %v395 = vadd.f32 %v367, %v391
  %396 = vset.pattern.permute.xlu0 6
  %397 = vperm.xlu0 %396, %v220
  %v398 = vpop.permute.xlu0 %397
  %v400 = vlaneseq
  %v401 = vshrl.u32 %v400, 7
  %v402 = vsub.s32 6, %v401
  %v403 = vrot.slane %v205, %v402
  %v404 = vlaneseq
  %v405 = vshrl.u32 %v404, 7
  %v406 = vsub.s32 6, %v405
  %v407 = vrot.slane %v207, %v406
  %v408 = vlaneseq
  %v409 = vshrl.u32 %v408, 7
  %v410 = vsub.s32 6, %v409
  %v411 = vrot.slane %v209, %v410
  %v412 = vlaneseq
  %v413 = vshrl.u32 %v412, 7
  %v414 = vsub.s32 6, %v413
  %v415 = vrot.slane %v211, %v414
  %v416 = vmul.f32 %v398, %v403
  %v417 = vmul.f32 %v398, %v407
  %v418 = vmul.f32 %v398, %v411
  %v419 = vmul.f32 %v398, %v415
  %v420 = vadd.f32 %v392, %v416
  %v421 = vadd.f32 %v393, %v417
  %v422 = vadd.f32 %v394, %v418
  %v423 = vadd.f32 %v395, %v419
  %424 = vset.pattern.permute.xlu0 7
  %425 = vperm.xlu0 %424, %v220
  %v426 = vpop.permute.xlu0 %425
  %v428 = vlaneseq
  %v429 = vshrl.u32 %v428, 7
  %v430 = vsub.s32 7, %v429
  %v431 = vrot.slane %v205, %v430
  %v432 = vlaneseq
  %v433 = vshrl.u32 %v432, 7
  %v434 = vsub.s32 7, %v433
  %v435 = vrot.slane %v207, %v434
  %v436 = vlaneseq
  %v437 = vshrl.u32 %v436, 7
  %v438 = vsub.s32 7, %v437
  %v439 = vrot.slane %v209, %v438
  %v440 = vlaneseq
  %v441 = vshrl.u32 %v440, 7
  %v442 = vsub.s32 7, %v441
  %v443 = vrot.slane %v211, %v442
  %v444 = vmul.f32 %v426, %v431
  %v445 = vmul.f32 %v426, %v435
  %v446 = vmul.f32 %v426, %v439
  %v447 = vmul.f32 %v426, %v443
  %v448 = vadd.f32 %v420, %v444
  %v449 = vadd.f32 %v421, %v445
  %v450 = vadd.f32 %v422, %v446
  %v451 = vadd.f32 %v423, %v447
  %452 = vset.pattern.permute.xlu0 8
  %453 = vperm.xlu0 %452, %v220
  %v454 = vpop.permute.xlu0 %453
  %v456 = vlaneseq
  %v457 = vshrl.u32 %v456, 7
  %v458 = vsub.s32 0, %v457
  %v459 = vrot.slane %v213, %v458
  %v460 = vlaneseq
  %v461 = vshrl.u32 %v460, 7
  %v462 = vsub.s32 0, %v461
  %v463 = vrot.slane %v215, %v462
  %v464 = vlaneseq
  %v465 = vshrl.u32 %v464, 7
  %v466 = vsub.s32 0, %v465
  %v467 = vrot.slane %v217, %v466
  %v468 = vlaneseq
  %v469 = vshrl.u32 %v468, 7
  %v470 = vsub.s32 0, %v469
  %v471 = vrot.slane %v219, %v470
  %v472 = vmul.f32 %v454, %v459
  %v473 = vmul.f32 %v454, %v463
  %v474 = vmul.f32 %v454, %v467
  %v475 = vmul.f32 %v454, %v471
  %v476 = vadd.f32 %v448, %v472
  %v477 = vadd.f32 %v449, %v473
  %v478 = vadd.f32 %v450, %v474
  %v479 = vadd.f32 %v451, %v475
  %480 = vset.pattern.permute.xlu0 9
  %481 = vperm.xlu0 %480, %v220
  %v482 = vpop.permute.xlu0 %481
  %v484 = vlaneseq
  %v485 = vshrl.u32 %v484, 7
  %v486 = vsub.s32 1, %v485
  %v487 = vrot.slane %v213, %v486
  %v488 = vlaneseq
  %v489 = vshrl.u32 %v488, 7
  %v490 = vsub.s32 1, %v489
  %v491 = vrot.slane %v215, %v490
  %v492 = vlaneseq
  %v493 = vshrl.u32 %v492, 7
  %v494 = vsub.s32 1, %v493
  %v495 = vrot.slane %v217, %v494
  %v496 = vlaneseq
  %v497 = vshrl.u32 %v496, 7
  %v498 = vsub.s32 1, %v497
  %v499 = vrot.slane %v219, %v498
  %v500 = vmul.f32 %v482, %v487
  %v501 = vmul.f32 %v482, %v491
  %v502 = vmul.f32 %v482, %v495
  %v503 = vmul.f32 %v482, %v499
  %v504 = vadd.f32 %v476, %v500
  %v505 = vadd.f32 %v477, %v501
  %v506 = vadd.f32 %v478, %v502
  %v507 = vadd.f32 %v479, %v503
  %508 = vset.pattern.permute.xlu0 10
  %509 = vperm.xlu0 %508, %v220
  %v510 = vpop.permute.xlu0 %509
  %v512 = vlaneseq
  %v513 = vshrl.u32 %v512, 7
  %v514 = vsub.s32 2, %v513
  %v515 = vrot.slane %v213, %v514
  %v516 = vlaneseq
  %v517 = vshrl.u32 %v516, 7
  %v518 = vsub.s32 2, %v517
  %v519 = vrot.slane %v215, %v518
  %v520 = vlaneseq
  %v521 = vshrl.u32 %v520, 7
  %v522 = vsub.s32 2, %v521
  %v523 = vrot.slane %v217, %v522
  %v524 = vlaneseq
  %v525 = vshrl.u32 %v524, 7
  %v526 = vsub.s32 2, %v525
  %v527 = vrot.slane %v219, %v526
  %v528 = vmul.f32 %v510, %v515
  %v529 = vmul.f32 %v510, %v519
  %v530 = vmul.f32 %v510, %v523
  %v531 = vmul.f32 %v510, %v527
  %v532 = vadd.f32 %v504, %v528
  %v533 = vadd.f32 %v505, %v529
  %v534 = vadd.f32 %v506, %v530
  %v535 = vadd.f32 %v507, %v531
  %536 = vset.pattern.permute.xlu0 11
  %537 = vperm.xlu0 %536, %v220
  %v538 = vpop.permute.xlu0 %537
  %v540 = vlaneseq
  %v541 = vshrl.u32 %v540, 7
  %v542 = vsub.s32 3, %v541
  %v543 = vrot.slane %v213, %v542
  %v544 = vlaneseq
  %v545 = vshrl.u32 %v544, 7
  %v546 = vsub.s32 3, %v545
  %v547 = vrot.slane %v215, %v546
  %v548 = vlaneseq
  %v549 = vshrl.u32 %v548, 7
  %v550 = vsub.s32 3, %v549
  %v551 = vrot.slane %v217, %v550
  %v552 = vlaneseq
  %v553 = vshrl.u32 %v552, 7
  %v554 = vsub.s32 3, %v553
  %v555 = vrot.slane %v219, %v554
  %v556 = vmul.f32 %v538, %v543
  %v557 = vmul.f32 %v538, %v547
  %v558 = vmul.f32 %v538, %v551
  %v559 = vmul.f32 %v538, %v555
  %v560 = vadd.f32 %v532, %v556
  %v561 = vadd.f32 %v533, %v557
  %v562 = vadd.f32 %v534, %v558
  %v563 = vadd.f32 %v535, %v559
  %564 = vset.pattern.permute.xlu0 12
  %565 = vperm.xlu0 %564, %v220
  %v566 = vpop.permute.xlu0 %565
  %v568 = vlaneseq
  %v569 = vshrl.u32 %v568, 7
  %v570 = vsub.s32 4, %v569
  %v571 = vrot.slane %v213, %v570
  %v572 = vlaneseq
  %v573 = vshrl.u32 %v572, 7
  %v574 = vsub.s32 4, %v573
  %v575 = vrot.slane %v215, %v574
  %v576 = vlaneseq
  %v577 = vshrl.u32 %v576, 7
  %v578 = vsub.s32 4, %v577
  %v579 = vrot.slane %v217, %v578
  %v580 = vlaneseq
  %v581 = vshrl.u32 %v580, 7
  %v582 = vsub.s32 4, %v581
  %v583 = vrot.slane %v219, %v582
  %v584 = vmul.f32 %v566, %v571
  %v585 = vmul.f32 %v566, %v575
  %v586 = vmul.f32 %v566, %v579
  %v587 = vmul.f32 %v566, %v583
  %v588 = vadd.f32 %v560, %v584
  %v589 = vadd.f32 %v561, %v585
  %v590 = vadd.f32 %v562, %v586
  %v591 = vadd.f32 %v563, %v587
  %592 = vset.pattern.permute.xlu0 13
  %593 = vperm.xlu0 %592, %v220
  %v594 = vpop.permute.xlu0 %593
  %v596 = vlaneseq
  %v597 = vshrl.u32 %v596, 7
  %v598 = vsub.s32 5, %v597
  %v599 = vrot.slane %v213, %v598
  %v600 = vlaneseq
  %v601 = vshrl.u32 %v600, 7
  %v602 = vsub.s32 5, %v601
  %v603 = vrot.slane %v215, %v602
  %v604 = vlaneseq
  %v605 = vshrl.u32 %v604, 7
  %v606 = vsub.s32 5, %v605
  %v607 = vrot.slane %v217, %v606
  %v608 = vlaneseq
  %v609 = vshrl.u32 %v608, 7
  %v610 = vsub.s32 5, %v609
  %v611 = vrot.slane %v219, %v610
  %v612 = vmul.f32 %v594, %v599
  %v613 = vmul.f32 %v594, %v603
  %v614 = vmul.f32 %v594, %v607
  %v615 = vmul.f32 %v594, %v611
  %v616 = vadd.f32 %v588, %v612
  %v617 = vadd.f32 %v589, %v613
  %v618 = vadd.f32 %v590, %v614
  %v619 = vadd.f32 %v591, %v615
  %620 = vset.pattern.permute.xlu0 14
  %621 = vperm.xlu0 %620, %v220
  %v622 = vpop.permute.xlu0 %621
  %v624 = vlaneseq
  %v625 = vshrl.u32 %v624, 7
  %v626 = vsub.s32 6, %v625
  %v627 = vrot.slane %v213, %v626
  %v628 = vlaneseq
  %v629 = vshrl.u32 %v628, 7
  %v630 = vsub.s32 6, %v629
  %v631 = vrot.slane %v215, %v630
  %v632 = vlaneseq
  %v633 = vshrl.u32 %v632, 7
  %v634 = vsub.s32 6, %v633
  %v635 = vrot.slane %v217, %v634
  %v636 = vlaneseq
  %v637 = vshrl.u32 %v636, 7
  %v638 = vsub.s32 6, %v637
  %v639 = vrot.slane %v219, %v638
  %v640 = vmul.f32 %v622, %v627
  %v641 = vmul.f32 %v622, %v631
  %v642 = vmul.f32 %v622, %v635
  %v643 = vmul.f32 %v622, %v639
  %v644 = vadd.f32 %v616, %v640
  %v645 = vadd.f32 %v617, %v641
  %v646 = vadd.f32 %v618, %v642
  %v647 = vadd.f32 %v619, %v643
  %648 = vset.pattern.permute.xlu0 15
  %649 = vperm.xlu0 %648, %v220
  %v650 = vpop.permute.xlu0 %649
  %v652 = vlaneseq
  %v653 = vshrl.u32 %v652, 7
  %v654 = vsub.s32 7, %v653
  %v655 = vrot.slane %v213, %v654
  %v656 = vlaneseq
  %v657 = vshrl.u32 %v656, 7
  %v658 = vsub.s32 7, %v657
  %v659 = vrot.slane %v215, %v658
  %v660 = vlaneseq
  %v661 = vshrl.u32 %v660, 7
  %v662 = vsub.s32 7, %v661
  %v663 = vrot.slane %v217, %v662
  %v664 = vlaneseq
  %v665 = vshrl.u32 %v664, 7
  %v666 = vsub.s32 7, %v665
  %v667 = vrot.slane %v219, %v666
  %v668 = vmul.f32 %v650, %v655
  %v669 = vmul.f32 %v650, %v659
  %v670 = vmul.f32 %v650, %v663
  %v671 = vmul.f32 %v650, %v667
  %v672 = vadd.f32 %v644, %v668
  %v673 = vadd.f32 %v645, %v669
  %v674 = vadd.f32 %v646, %v670
  %v675 = vadd.f32 %v647, %v671
  %v676 = vxor.u32 %v672, 2147483648
  %v677 = vxor.u32 %v673, 2147483648
  %v678 = vxor.u32 %v674, 2147483648
  %v679 = vxor.u32 %v675, 2147483648
  %v680 = vmul.f32 %v676, 1.442695
  %v681 = vpow.pop %v680
  %v682 = vmul.f32 %v677, 1.442695
  %v683 = vpow.pop %v682
  %v684 = vmul.f32 %v678, 1.442695
  %v685 = vpow.pop %v684
  %v686 = vmul.f32 %v679, 1.442695
  %v687 = vpow.pop %v686
  %v688 = vadd.f32 %v681, 1.0
  %v689 = vadd.f32 %v683, 1.0
  %v690 = vadd.f32 %v685, 1.0
  %v691 = vadd.f32 %v687, 1.0
  %v692 = vrcp.pop %v688
  %v693 = vmul.f32 1.0, %v692
  %v694 = vrcp.pop %v689
  %v695 = vmul.f32 1.0, %v694
  %v696 = vrcp.pop %v690
  %v697 = vmul.f32 1.0, %v696
  %v698 = vrcp.pop %v691
  %v699 = vmul.f32 1.0, %v698
  %v700 = vld [vmem:[%s5] sm:$0xf]
  %v701 = vld [vmem:[%s6] sm:$0xf]
  %703 = vset.pattern.permute.xlu0 0
  %704 = vperm.xlu0 %703, %v701
  %v705 = vpop.permute.xlu0 %704
  %708 = vset.pattern.permute.xlu0 0
  %709 = vperm.xlu0 %708, %v700
  %v710 = vpop.permute.xlu0 %709
  %v712 = vlaneseq
  %v713 = vshrl.u32 %v712, 7
  %v714 = vsub.s32 0, %v713
  %v715 = vrot.slane %v693, %v714
  %v716 = vlaneseq
  %v717 = vshrl.u32 %v716, 7
  %v718 = vsub.s32 0, %v717
  %v719 = vrot.slane %v695, %v718
  %v720 = vlaneseq
  %v721 = vshrl.u32 %v720, 7
  %v722 = vsub.s32 0, %v721
  %v723 = vrot.slane %v697, %v722
  %v724 = vlaneseq
  %v725 = vshrl.u32 %v724, 7
  %v726 = vsub.s32 0, %v725
  %v727 = vrot.slane %v699, %v726
  %v728 = vmul.f32 %v710, %v715
  %v729 = vmul.f32 %v710, %v719
  %v730 = vmul.f32 %v710, %v723
  %v731 = vmul.f32 %v710, %v727
  %v732 = vadd.f32 %v705, %v728
  %v733 = vadd.f32 %v705, %v729
  %v734 = vadd.f32 %v705, %v730
  %v735 = vadd.f32 %v705, %v731
  %736 = vset.pattern.permute.xlu0 1
  %737 = vperm.xlu0 %736, %v700
  %v738 = vpop.permute.xlu0 %737
  %v740 = vlaneseq
  %v741 = vshrl.u32 %v740, 7
  %v742 = vsub.s32 1, %v741
  %v743 = vrot.slane %v693, %v742
  %v744 = vlaneseq
  %v745 = vshrl.u32 %v744, 7
  %v746 = vsub.s32 1, %v745
  %v747 = vrot.slane %v695, %v746
  %v748 = vlaneseq
  %v749 = vshrl.u32 %v748, 7
  %v750 = vsub.s32 1, %v749
  %v751 = vrot.slane %v697, %v750
  %v752 = vlaneseq
  %v753 = vshrl.u32 %v752, 7
  %v754 = vsub.s32 1, %v753
  %v755 = vrot.slane %v699, %v754
  %v756 = vmul.f32 %v738, %v743
  %v757 = vmul.f32 %v738, %v747
  %v758 = vmul.f32 %v738, %v751
  %v759 = vmul.f32 %v738, %v755
  %v760 = vadd.f32 %v732, %v756
  %v761 = vadd.f32 %v733, %v757
  %v762 = vadd.f32 %v734, %v758
  %v763 = vadd.f32 %v735, %v759
  %764 = vset.pattern.permute.xlu0 2
  %765 = vperm.xlu0 %764, %v700
  %v766 = vpop.permute.xlu0 %765
  %v768 = vlaneseq
  %v769 = vshrl.u32 %v768, 7
  %v770 = vsub.s32 2, %v769
  %v771 = vrot.slane %v693, %v770
  %v772 = vlaneseq
  %v773 = vshrl.u32 %v772, 7
  %v774 = vsub.s32 2, %v773
  %v775 = vrot.slane %v695, %v774
  %v776 = vlaneseq
  %v777 = vshrl.u32 %v776, 7
  %v778 = vsub.s32 2, %v777
  %v779 = vrot.slane %v697, %v778
  %v780 = vlaneseq
  %v781 = vshrl.u32 %v780, 7
  %v782 = vsub.s32 2, %v781
  %v783 = vrot.slane %v699, %v782
  %v784 = vmul.f32 %v766, %v771
  %v785 = vmul.f32 %v766, %v775
  %v786 = vmul.f32 %v766, %v779
  %v787 = vmul.f32 %v766, %v783
  %v788 = vadd.f32 %v760, %v784
  %v789 = vadd.f32 %v761, %v785
  %v790 = vadd.f32 %v762, %v786
  %v791 = vadd.f32 %v763, %v787
  %792 = vset.pattern.permute.xlu0 3
  %793 = vperm.xlu0 %792, %v700
  %v794 = vpop.permute.xlu0 %793
  %v796 = vlaneseq
  %v797 = vshrl.u32 %v796, 7
  %v798 = vsub.s32 3, %v797
  %v799 = vrot.slane %v693, %v798
  %v800 = vlaneseq
  %v801 = vshrl.u32 %v800, 7
  %v802 = vsub.s32 3, %v801
  %v803 = vrot.slane %v695, %v802
  %v804 = vlaneseq
  %v805 = vshrl.u32 %v804, 7
  %v806 = vsub.s32 3, %v805
  %v807 = vrot.slane %v697, %v806
  %v808 = vlaneseq
  %v809 = vshrl.u32 %v808, 7
  %v810 = vsub.s32 3, %v809
  %v811 = vrot.slane %v699, %v810
  %v812 = vmul.f32 %v794, %v799
  %v813 = vmul.f32 %v794, %v803
  %v814 = vmul.f32 %v794, %v807
  %v815 = vmul.f32 %v794, %v811
  %v816 = vadd.f32 %v788, %v812
  %v817 = vadd.f32 %v789, %v813
  %v818 = vadd.f32 %v790, %v814
  %v819 = vadd.f32 %v791, %v815
  %820 = vset.pattern.permute.xlu0 4
  %821 = vperm.xlu0 %820, %v700
  %v822 = vpop.permute.xlu0 %821
  %v824 = vlaneseq
  %v825 = vshrl.u32 %v824, 7
  %v826 = vsub.s32 4, %v825
  %v827 = vrot.slane %v693, %v826
  %v828 = vlaneseq
  %v829 = vshrl.u32 %v828, 7
  %v830 = vsub.s32 4, %v829
  %v831 = vrot.slane %v695, %v830
  %v832 = vlaneseq
  %v833 = vshrl.u32 %v832, 7
  %v834 = vsub.s32 4, %v833
  %v835 = vrot.slane %v697, %v834
  %v836 = vlaneseq
  %v837 = vshrl.u32 %v836, 7
  %v838 = vsub.s32 4, %v837
  %v839 = vrot.slane %v699, %v838
  %v840 = vmul.f32 %v822, %v827
  %v841 = vmul.f32 %v822, %v831
  %v842 = vmul.f32 %v822, %v835
  %v843 = vmul.f32 %v822, %v839
  %v844 = vadd.f32 %v816, %v840
  %v845 = vadd.f32 %v817, %v841
  %v846 = vadd.f32 %v818, %v842
  %v847 = vadd.f32 %v819, %v843
  %848 = vset.pattern.permute.xlu0 5
  %849 = vperm.xlu0 %848, %v700
  %v850 = vpop.permute.xlu0 %849
  %v852 = vlaneseq
  %v853 = vshrl.u32 %v852, 7
  %v854 = vsub.s32 5, %v853
  %v855 = vrot.slane %v693, %v854
  %v856 = vlaneseq
  %v857 = vshrl.u32 %v856, 7
  %v858 = vsub.s32 5, %v857
  %v859 = vrot.slane %v695, %v858
  %v860 = vlaneseq
  %v861 = vshrl.u32 %v860, 7
  %v862 = vsub.s32 5, %v861
  %v863 = vrot.slane %v697, %v862
  %v864 = vlaneseq
  %v865 = vshrl.u32 %v864, 7
  %v866 = vsub.s32 5, %v865
  %v867 = vrot.slane %v699, %v866
  %v868 = vmul.f32 %v850, %v855
  %v869 = vmul.f32 %v850, %v859
  %v870 = vmul.f32 %v850, %v863
  %v871 = vmul.f32 %v850, %v867
  %v872 = vadd.f32 %v844, %v868
  %v873 = vadd.f32 %v845, %v869
  %v874 = vadd.f32 %v846, %v870
  %v875 = vadd.f32 %v847, %v871
  %876 = vset.pattern.permute.xlu0 6
  %877 = vperm.xlu0 %876, %v700
  %v878 = vpop.permute.xlu0 %877
  %v880 = vlaneseq
  %v881 = vshrl.u32 %v880, 7
  %v882 = vsub.s32 6, %v881
  %v883 = vrot.slane %v693, %v882
  %v884 = vlaneseq
  %v885 = vshrl.u32 %v884, 7
  %v886 = vsub.s32 6, %v885
  %v887 = vrot.slane %v695, %v886
  %v888 = vlaneseq
  %v889 = vshrl.u32 %v888, 7
  %v890 = vsub.s32 6, %v889
  %v891 = vrot.slane %v697, %v890
  %v892 = vlaneseq
  %v893 = vshrl.u32 %v892, 7
  %v894 = vsub.s32 6, %v893
  %v895 = vrot.slane %v699, %v894
  %v896 = vmul.f32 %v878, %v883
  %v897 = vmul.f32 %v878, %v887
  %v898 = vmul.f32 %v878, %v891
  %v899 = vmul.f32 %v878, %v895
  %v900 = vadd.f32 %v872, %v896
  %v901 = vadd.f32 %v873, %v897
  %v902 = vadd.f32 %v874, %v898
  %v903 = vadd.f32 %v875, %v899
  %904 = vset.pattern.permute.xlu0 7
  %905 = vperm.xlu0 %904, %v700
  %v906 = vpop.permute.xlu0 %905
  %v908 = vlaneseq
  %v909 = vshrl.u32 %v908, 7
  %v910 = vsub.s32 7, %v909
  %v911 = vrot.slane %v693, %v910
  %v912 = vlaneseq
  %v913 = vshrl.u32 %v912, 7
  %v914 = vsub.s32 7, %v913
  %v915 = vrot.slane %v695, %v914
  %v916 = vlaneseq
  %v917 = vshrl.u32 %v916, 7
  %v918 = vsub.s32 7, %v917
  %v919 = vrot.slane %v697, %v918
  %v920 = vlaneseq
  %v921 = vshrl.u32 %v920, 7
  %v922 = vsub.s32 7, %v921
  %v923 = vrot.slane %v699, %v922
  %v924 = vmul.f32 %v906, %v911
  %v925 = vmul.f32 %v906, %v915
  %v926 = vmul.f32 %v906, %v919
  %v927 = vmul.f32 %v906, %v923
  %v928 = vadd.f32 %v900, %v924
  %v929 = vadd.f32 %v901, %v925
  %v930 = vadd.f32 %v902, %v926
  %v931 = vadd.f32 %v903, %v927
  %v932 = vxor.u32 %v928, 2147483648
  %v933 = vxor.u32 %v929, 2147483648
  %v934 = vxor.u32 %v930, 2147483648
  %v935 = vxor.u32 %v931, 2147483648
  %v936 = vmul.f32 %v932, 1.442695
  %v937 = vpow.pop %v936
  %v938 = vmul.f32 %v933, 1.442695
  %v939 = vpow.pop %v938
  %v940 = vmul.f32 %v934, 1.442695
  %v941 = vpow.pop %v940
  %v942 = vmul.f32 %v935, 1.442695
  %v943 = vpow.pop %v942
  %v944 = vadd.f32 %v937, 1.0
  %v945 = vadd.f32 %v939, 1.0
  %v946 = vadd.f32 %v941, 1.0
  %v947 = vadd.f32 %v943, 1.0
  %v948 = vrcp.pop %v944
  %v949 = vmul.f32 1.0, %v948
  %v950 = vrcp.pop %v945
  %v951 = vmul.f32 1.0, %v950
  %v952 = vrcp.pop %v946
  %v953 = vmul.f32 1.0, %v952
  %v954 = vrcp.pop %v947
  %v955 = vmul.f32 1.0, %v954
  %v956 = vld [vmem:[%s7] sm:$0x1]
  %v957 = vld [vmem:[#allocation2] sm:$0x1]
  %959 = vset.pattern.permute.xlu0 0
  %960 = vperm.xlu0 %959, %v957
  %v961 = vpop.permute.xlu0 %960
  %v963 = vlaneseq
  %v964 = vshrl.u32 %v963, 7
  %v965 = vsub.s32 0, %v964
  %v966 = vrot.slane %v961, %v965
  %968 = vset.pattern.permute.xlu0 0
  %969 = vperm.xlu0 %968, %v956
  %v970 = vpop.permute.xlu0 %969
  %v972 = vlaneseq
  %v973 = vshrl.u32 %v972, 7
  %v974 = vsub.s32 0, %v973
  %v975 = vrot.slane %v970, %v974
  %v976 = vmul.f32 %v975, %v949
  %v977 = vmul.f32 %v975, %v951
  %v978 = vmul.f32 %v975, %v953
  %v979 = vmul.f32 %v975, %v955
  %v980 = vadd.f32 %v966, %v976
  %v981 = vadd.f32 %v966, %v977
  %v982 = vadd.f32 %v966, %v978
  %v983 = vadd.f32 %v966, %v979
  %984 = vset.pattern.permute.xlu0 1
  %985 = vperm.xlu0 %984, %v956
  %v986 = vpop.permute.xlu0 %985
  %v988 = vlaneseq
  %v989 = vshrl.u32 %v988, 7
  %v990 = vsub.s32 0, %v989
  %v991 = vrot.slane %v986, %v990
  %v992 = vmul.f32 %v991, %v949
  %v993 = vmul.f32 %v991, %v951
  %v994 = vmul.f32 %v991, %v953
  %v995 = vmul.f32 %v991, %v955
  %v1000 = vrot.slane %v992, 1
  %v1001 = vrot.slane %v993, 1
  %v1002 = vrot.slane %v994, 1
  %v1003 = vrot.slane %v995, 1
  %v1008 = vadd.f32 %v980, %v1000
  %v1009 = vadd.f32 %v981, %v1001
  %v1010 = vadd.f32 %v982, %v1002
  %v1011 = vadd.f32 %v983, %v1003
  %1012 = vset.pattern.permute.xlu0 2
  %1013 = vperm.xlu0 %1012, %v956
  %v1014 = vpop.permute.xlu0 %1013
  %v1016 = vlaneseq
  %v1017 = vshrl.u32 %v1016, 7
  %v1018 = vsub.s32 0, %v1017
  %v1019 = vrot.slane %v1014, %v1018
  %v1020 = vmul.f32 %v1019, %v949
  %v1021 = vmul.f32 %v1019, %v951
  %v1022 = vmul.f32 %v1019, %v953
  %v1023 = vmul.f32 %v1019, %v955
  %v1028 = vrot.slane %v1020, 2
  %v1029 = vrot.slane %v1021, 2
  %v1030 = vrot.slane %v1022, 2
  %v1031 = vrot.slane %v1023, 2
  %v1036 = vadd.f32 %v1008, %v1028
  %v1037 = vadd.f32 %v1009, %v1029
  %v1038 = vadd.f32 %v1010, %v1030
  %v1039 = vadd.f32 %v1011, %v1031
  %1040 = vset.pattern.permute.xlu0 3
  %1041 = vperm.xlu0 %1040, %v956
  %v1042 = vpop.permute.xlu0 %1041
  %v1044 = vlaneseq
  %v1045 = vshrl.u32 %v1044, 7
  %v1046 = vsub.s32 0, %v1045
  %v1047 = vrot.slane %v1042, %v1046
  %v1048 = vmul.f32 %v1047, %v949
  %v1049 = vmul.f32 %v1047, %v951
  %v1050 = vmul.f32 %v1047, %v953
  %v1051 = vmul.f32 %v1047, %v955
  %v1056 = vrot.slane %v1048, 3
  %v1057 = vrot.slane %v1049, 3
  %v1058 = vrot.slane %v1050, 3
  %v1059 = vrot.slane %v1051, 3
  %v1064 = vadd.f32 %v1036, %v1056
  %v1065 = vadd.f32 %v1037, %v1057
  %v1066 = vadd.f32 %v1038, %v1058
  %v1067 = vadd.f32 %v1039, %v1059
  %v1068 = vxor.u32 %v1064, 2147483648
  %v1069 = vxor.u32 %v1065, 2147483648
  %v1070 = vxor.u32 %v1066, 2147483648
  %v1071 = vxor.u32 %v1067, 2147483648
  %v1072 = vmul.f32 %v1068, 1.442695
  %v1073 = vpow.pop %v1072
  %v1074 = vmul.f32 %v1069, 1.442695
  %v1075 = vpow.pop %v1074
  %v1076 = vmul.f32 %v1070, 1.442695
  %v1077 = vpow.pop %v1076
  %v1078 = vmul.f32 %v1071, 1.442695
  %v1079 = vpow.pop %v1078
  %v1080 = vadd.f32 %v1073, 1.0
  %v1081 = vadd.f32 %v1075, 1.0
  %v1082 = vadd.f32 %v1077, 1.0
  %v1083 = vadd.f32 %v1079, 1.0
  %v1084 = vrcp.pop %v1080
  %v1085 = vmul.f32 1.0, %v1084
  %v1086 = vrcp.pop %v1081
  %v1087 = vmul.f32 1.0, %v1086
  %v1088 = vrcp.pop %v1082
  %v1089 = vmul.f32 1.0, %v1088
  %v1090 = vrcp.pop %v1083
  %v1091 = vmul.f32 1.0, %v1090
  %v1096 = vcombine.low %v1085, %v1087
  %v1097 = vcombine.low %v1089, %v1091
  %v1099 = vunpack.c.l.s4 1966171168
  %v1100 = vunpack.c.0.s8 %v1099
  %v1101 = vlaneseq
  %v1102 = vshrl.u32 %v1101, 7
  %v1103 = vsub.s32 %v1100, %v1102
  %v1104 = vrot.slane %v1096, %v1103
  %v1106 = vunpack.c.l.s4 1966171168
  %v1107 = vunpack.c.0.s8 %v1106
  %v1108 = vlaneseq
  %v1109 = vshrl.u32 %v1108, 7
  %v1110 = vsub.s32 %v1107, %v1109
  %v1111 = vrot.slane %v1097, %v1110
  %v1112 = vcombine.low %v1104, %v1111
  %v1114 = vunpack.c.l.s4 1966171168
  %v1115 = vunpack.c.0.s8 %v1114
  %v1116 = vlaneseq
  %v1117 = vshrl.u32 %v1116, 7
  %v1118 = vsub.s32 %v1115, %v1117
  %v1119 = vrot.slane %v1112, %v1118
  %v1121 = vlaneseq
  %vm1122 = vcmp.ge.s32.totalorder %v1121, 0
  %vm1123 = vcmp.lt.s32.totalorder %v1121, 512
  %vm1124 = vmand %vm1122, %vm1123
  %1125 = vst.msk [vmem:[%s9] sm:$0xf] %vm1124, %v1119
  // Predicated region
  $region38: #{classifier_forward.1} parent=0 // pred_check
    _
  $region39: #{classifier_forward.1} parent=0 // pred_check_branch
    %1127 = sbr.rel (0) target = $region41
  $region40: #{classifier_forward.1} parent=0 // pred_region
    _
  $region41: #{classifier_forward.1} parent=0 // pred_fallthru
    _
  // Predicated region
  $region42: #{classifier_forward.1} parent=0 // pred_check
    _
  $region43: #{classifier_forward.1} parent=0 // pred_check_branch
    %1129 = sbr.rel (0) target = $region45
  $region44: #{classifier_forward.1} parent=0 // pred_region
    _
  $region45: #{classifier_forward.1} parent=0 // pred_fallthru
    _

</llo_original>
